<compile_context>
chip_gen: v6e
topology: v6e:2x2x1
jax: 0.10.0
libtpu: 0.0.40
codegen_flags: <defaults>
</compile_context>

<pallas_src>
import functools

import jax
import jax.numpy as jnp
from jax.experimental import pallas as pl
from jax.experimental.pallas import tpu as pltpu


def _embrace_kernel(idx_ref, x_ref, o_ref, *, tile_seq):
    """Grid: (batch_tiles, emb_tiles, seq_tiles).

    idx_ref : (TB, TE) int32       sampled sequence index per (batch, emb) slot
    x_ref   : (TB, ts, TE) tokens  streamed tile (native dtype)
    o_ref   : (TB, TE) float32     output block, resident across the seq axis
    """
    k = pl.program_id(2)

    @pl.when(k == 0)
    def _():
        o_ref[...] = jnp.zeros_like(o_ref)

    x = x_ref[...]                            # (TB, ts, TE)
    # Fold the tile's global seq offset into the small (TB, TE) index block
    # instead of adding it to the full 3-D iota every step.
    local = idx_ref[...] - k * tile_seq       # (TB, TE) int32

    seq_iota = jax.lax.broadcasted_iota(jnp.int32, x.shape, 1)
    onehot = seq_iota == local[:, None, :]    # (TB, ts, TE)

    # Exactly one element per (b, j) survives over the WHOLE sequence
    # (idx - k*ts lands in [0, ts) for exactly one tile k, and padded rows of
    # a partial last tile can never match), so the masked per-tile sum
    # accumulated into the f32 output reproduces tokens[b, idx[b, j], j].
    partial = jnp.sum(jnp.where(onehot, x, jnp.zeros_like(x)), axis=1)
    o_ref[...] += partial.astype(o_ref.dtype)


def _choose_tiles(bs, seq_len, emb_size, itemsize, target_bytes):
    """Pick (batch_tile, emb_tile, seq_tile).

    Obeys the (8,128)/full-dim tiling rule, keeps the streamed token tile near
    `target_bytes`, rounds the seq tile to the sublane-packing granularity of
    the token dtype, and splits the emb axis when there is only one batch tile
    so both v7x TensorCores get work.
    """
    # Batch tile.
    tb = bs if bs <= 8 else 8
    n_batch_tiles = -(-bs // tb)

    # Emb tile: full by default; split into two lane-dense halves when the
    # batch axis alone can't feed two TensorCores.
    te = emb_size
    if n_batch_tiles < 2 and emb_size >= 256 and emb_size % 256 == 0:
        te = emb_size // 2

    # Seq tile: dtype-aware rounding (8 rows f32, 16 bf16, 32 int8/fp8),
    # sized to ~target_bytes of streamed tokens per step.
    sub_mult = 8 * max(1, 4 // itemsize)
    if seq_len <= sub_mult:
        ts = seq_len
    else:
        rows = max(sub_mult, target_bytes // max(1, tb * te * itemsize))
        ts = min(seq_len, (rows // sub_mult) * sub_mult)
        ts = max(sub_mult, ts)
        if ts >= seq_len:
            ts = seq_len
    return tb, te, ts


def embracement_layer(tokens, key, *, target_tile_bytes=10 * 1024 * 1024):
    """Pallas implementation of EmbracementLayer.forward (p='multinomial').

    tokens: (bs, seq_len, emb_size), any float dtype (streamed as-is)
    key:    jax PRNG key used for the per-batch uniform index sampling
    returns: (bs, emb_size) float32
    """
    bs, seq_len, emb_size = tokens.shape

    # torch.multinomial(uniform, emb_size, replacement=True) == uniform i.i.d.
    # sampling over [0, seq_len).
    idx = jax.random.randint(key, (bs, emb_size), 0, seq_len, dtype=jnp.int32)

    itemsize = jnp.dtype(tokens.dtype).itemsize
    tb, te, ts = _choose_tiles(bs, seq_len, emb_size, itemsize,
                               target_tile_bytes)
    grid = (pl.cdiv(bs, tb), pl.cdiv(emb_size, te), pl.cdiv(seq_len, ts))

    kernel = functools.partial(_embrace_kernel, tile_seq=ts)

    flops = 3 * bs * seq_len * emb_size  # compare + select + add per element
    bytes_accessed = (bs * seq_len * emb_size * itemsize   # tokens stream
                      + bs * emb_size * 4                  # indices
                      + bs * emb_size * 4)                 # output

    return pl.pallas_call(
        kernel,
        out_shape=jax.ShapeDtypeStruct((bs, emb_size), jnp.float32),
        grid_spec=pltpu.PrefetchScalarGridSpec(
            num_scalar_prefetch=0,
            grid=grid,
            in_specs=[
                pl.BlockSpec((tb, te), lambda b, e, k: (b, e)),
                pl.BlockSpec((tb, ts, te), lambda b, e, k: (b, k, e)),
            ],
            out_specs=pl.BlockSpec((tb, te), lambda b, e, k: (b, e)),
        ),
        compiler_params=pltpu.CompilerParams(
            dimension_semantics=("parallel", "parallel", "arbitrary"),
            # 32 MiB scoped VMEM is safe on v5e (128 MiB phys), v6e (128 MiB)
            # and v7x (64 MiB); leaves room for the ~2x10 MiB token buffers.
            vmem_limit_bytes=32 * 1024 * 1024,
        ),
        cost_estimate=pl.CostEstimate(
            flops=flops, transcendentals=0, bytes_accessed=bytes_accessed),
    )(idx, tokens)


def _reference(tokens, key):
    bs, seq_len, emb_size = tokens.shape
    idx = jax.random.randint(key, (bs, emb_size), 0, seq_len, dtype=jnp.int32)
    return jnp.take_along_axis(tokens, idx[:, None, :], axis=1)[:, 0, :].astype(
        jnp.float32)


if __name__ == "__main__":
    # Small shapes consistent with the module's forward:
    # output_tokens_from_bert: (bs, seq_len, hidden_size)
    bs, seq_len, hidden_size = 2, 8, 32
    key = jax.random.PRNGKey(0)
    k_tok, k_idx, k_tok2, k_idx2 = jax.random.split(key, 4)

    tokens = jax.random.normal(k_tok, (bs, seq_len, hidden_size),
                               dtype=jnp.float32)
    out = embracement_layer(tokens, k_idx)
    out = jax.block_until_ready(out)

    assert out.shape == (bs, hidden_size), out.shape
    assert out.dtype == jnp.float32, out.dtype

    ref = _reference(tokens, k_idx)
    assert jnp.allclose(out, ref), "kernel output != reference gather"

    # Sanity: every output element equals SOME token at that emb position.
    tok = jax.device_get(tokens)
    o = jax.device_get(out)
    for b in range(bs):
        for j in range(hidden_size):
            candidates = tok[b, :, j]
            assert any(abs(o[b, j] - c) < 1e-6 for c in candidates), (b, j)

    # Second check: seq_len not a multiple of the seq tile (forces a padded
    # partial last tile + multi-step accumulation across the 'arbitrary' axis).
    seq_len2 = 20
    tokens2 = jax.random.normal(k_tok2, (bs, seq_len2, hidden_size),
                                dtype=jnp.float32)
    out2 = embracement_layer(tokens2, k_idx2, target_tile_bytes=2048)  # ts=8
    out2 = jax.block_until_ready(out2)
    ref2 = _reference(tokens2, k_idx2)
    assert jnp.allclose(out2, ref2), "partial-tile path != reference gather"

    print("KERNEL_OK")
</pallas_src>

<mosaic_0001>
module attributes {stable_mosaic.version = 11 : i64} {
  func.func @_embrace_kernel(%arg0: i32, %arg1: i32, %arg2: i32, %arg3: memref<2x32xi32, #tpu.memory_space<vmem>>, %arg4: memref<2x8x32xf32, #tpu.memory_space<vmem>>, %arg5: memref<2x32xf32, #tpu.memory_space<vmem>>) attributes {dimension_semantics = [#tpu.dimension_semantics<parallel>, #tpu.dimension_semantics<parallel>, #tpu.dimension_semantics<arbitrary>], iteration_bounds = array<i64: 1, 1, 1>, scalar_prefetch = 0 : i64, scratch_operands = 0 : i64, tpu.core_type = #tpu.core_type<tc>, window_params = [{transform_indices = @transform_0, window_bounds = array<i64: 2, 32>}, {transform_indices = @transform_1, window_bounds = array<i64: 2, 8, 32>}, {transform_indices = @transform_2, window_bounds = array<i64: 2, 32>}]} {
    %c0_i32 = arith.constant 0 : i32
    %0 = arith.cmpi eq, %arg2, %c0_i32 : i32
    %1 = arith.extui %0 : i1 to i32
    %c0_i32_0 = arith.constant 0 : i32
    %2 = arith.cmpi ne, %1, %c0_i32_0 : i32
    scf.if %2 {
      %cst_10 = arith.constant 0.000000e+00 : f32
      %18 = vector.broadcast %cst_10 : f32 to vector<2x32xf32>
      %c0_11 = arith.constant 0 : index
      %c0_12 = arith.constant 0 : index
      %19 = vector.load %arg5[%c0_11, %c0_12] : memref<2x32xf32, #tpu.memory_space<vmem>>, vector<2x32xf32>
      tpu.vector_store %arg5[%c0_11, %c0_12], %18 {strides = array<i32>} : memref<2x32xf32, #tpu.memory_space<vmem>>, vector<2x32xf32>,
    } else {
    }
    %c0 = arith.constant 0 : index
    %c0_1 = arith.constant 0 : index
    %c0_2 = arith.constant 0 : index
    %3 = vector.load %arg4[%c0, %c0_1, %c0_2] : memref<2x8x32xf32, #tpu.memory_space<vmem>>, vector<2x8x32xf32>
    %c0_3 = arith.constant 0 : index
    %c0_4 = arith.constant 0 : index
    %4 = vector.load %arg3[%c0_3, %c0_4] : memref<2x32xi32, #tpu.memory_space<vmem>>, vector<2x32xi32>
    %c8_i32 = arith.constant 8 : i32
    %5 = arith.muli %arg2, %c8_i32 : i32
    %6 = vector.broadcast %5 : i32 to vector<2x32xi32>
    %7 = arith.subi %4, %6 : vector<2x32xi32>
    %8 = tpu.iota {dimensions = array<i32: 1>} : vector<2x8x32xi32>
    %9 = vector.shape_cast %7 : vector<2x32xi32> to vector<2x1x32xi32>
    %10 = vector.broadcast %9 : vector<2x1x32xi32> to vector<2x8x32xi32>
    %11 = arith.cmpi eq, %8, %10 : vector<2x8x32xi32>
    %cst = arith.constant 0.000000e+00 : f32
    %12 = vector.broadcast %cst : f32 to vector<2x8x32xf32>
    %13 = arith.select %11, %3, %12 : vector<2x8x32xi1>, vector<2x8x32xf32>
    %cst_5 = arith.constant dense<0.000000e+00> : vector<2x32xf32>
    %14 = vector.multi_reduction <add>, %13, %cst_5 [1] : vector<2x8x32xf32> to vector<2x32xf32>
    %c0_6 = arith.constant 0 : index
    %c0_7 = arith.constant 0 : index
    %15 = vector.load %arg5[%c0_6, %c0_7] : memref<2x32xf32, #tpu.memory_space<vmem>>, vector<2x32xf32>
    %16 = arith.addf %15, %14 : vector<2x32xf32>
    %c0_8 = arith.constant 0 : index
    %c0_9 = arith.constant 0 : index
    %17 = vector.load %arg5[%c0_8, %c0_9] : memref<2x32xf32, #tpu.memory_space<vmem>>, vector<2x32xf32>
    tpu.vector_store %arg5[%c0_8, %c0_9], %16 {strides = array<i32>} : memref<2x32xf32, #tpu.memory_space<vmem>>, vector<2x32xf32>,
    return
  }
  func.func @transform_0(%arg0: i32, %arg1: i32, %arg2: i32) -> (i32, i32) {
    %c0_i32 = arith.constant 0 : i32
    return %arg0, %arg1 : i32, i32
  }
  func.func @transform_1(%arg0: i32, %arg1: i32, %arg2: i32) -> (i32, i32, i32) {
    %c0_i32 = arith.constant 0 : i32
    return %arg0, %arg2, %arg1 : i32, i32, i32
  }
  func.func @transform_2(%arg0: i32, %arg1: i32, %arg2: i32) -> (i32, i32) {
    %c0_i32 = arith.constant 0 : i32
    return %arg0, %arg1 : i32, i32
  }
}

</mosaic_0001>

<llo_original>
// kernel: tpu_custom_call.1
$region0: #{tpu_custom_call.1}
  #allocation0 [shape = 'u32[]', space=smem, size = 0x4, offset = 0x4, fixed_abs, tag = 'smem constant byte address 0x4 - core index']
  #allocation1 [shape = 'u32[144,128]{1,0:T(1,128)}', space=vmem, size = 0x12000, scoped, tag = 'internal scratch']
  %s0 = inlined_call_operand.hbm [shape: s32[2,32], index: 0, kind: input, shape index: {}]
  %s1 = inlined_call_operand.hbm [shape: f32[2,8,32], index: 1, kind: input, shape index: {}]
  %s2 = inlined_call_operand.hbm [shape: f32[2,32], index: 2, kind: output, shape index: {}]
  %s3 = sld [smem:[#allocation0]]
  $region30: #{tpu_custom_call.1} parent=0
    _
  %s5 = ssub.s32 1, %s3
  %s6 = scalar_select 0, %s5, %s3
  $region1: #{tpu_custom_call.1} parent=0
    #allocation2 [shape = 'u8[1024]{0}', space=vmem, size = 0x400, scoped, tag = 'input window, operand 0, single buffered']
    #allocation3 [shape = 's32[1]{0}', space=sflag, size = 0x4, scoped, tag = 'scoped memory for tpu_custom_call.1']
    #allocation4 [shape = 's32[1]{0}', space=sflag, size = 0x4, scoped, tag = 'scoped memory for tpu_custom_call.1']
    #allocation5 [shape = 'u8[8192]{0}', space=vmem, size = 0x2000, scoped, tag = 'input window, operand 1, single buffered']
    #allocation6 [shape = 's32[1]{0}', space=sflag, size = 0x4, scoped, tag = 'scoped memory for tpu_custom_call.1']
    #allocation7 [shape = 'u8[1024]{0}', space=vmem, size = 0x400, scoped, tag = 'output window, operand 0, single buffered']
    %7 = vsyncpa [#allocation3], 0
    %8 = vsyncpa [#allocation6], 0
    %9 = vsyncpa [#allocation4], 0
    // Predicated region
    $region2: #{tpu_custom_call.1} parent=1 // pred_check
      _
    $region3: #{tpu_custom_call.1} parent=1 // pred_check_branch
      %11 = sbr.rel (0) target = $region5
    $region4: #{tpu_custom_call.1} parent=1 // pred_region
      %s13 = ssub.s32 32, 32
      %14 = vsyncadd [#allocation3], %s13
      %s16 = sshll.u32 [#allocation2], 4
      %s17 = int_to_ptr.vmem [resolvable:$true] %s16
      %19 = dma.hbm_to_vmem [thread:$0]  %s0, 32, %s17, [#allocation3]
    $region5: #{tpu_custom_call.1} parent=1 // pred_fallthru
      _
    // Predicated region
    $region6: #{tpu_custom_call.1} parent=1 // pred_check
      _
    $region7: #{tpu_custom_call.1} parent=1 // pred_check_branch
      %21 = sbr.rel (0) target = $region9
    $region8: #{tpu_custom_call.1} parent=1 // pred_region
      %s23 = ssub.s32 256, 256
      %24 = vsyncadd [#allocation6], %s23
      %s25 = sshll.u32 [#allocation5], 4
      %s26 = int_to_ptr.vmem [resolvable:$true] %s25
      %31 = dma.hbm_to_vmem [thread:$0]  %s1, 256, %s26, [#allocation6], 128, 128, 8
    $region9: #{tpu_custom_call.1} parent=1 // pred_fallthru
      _
    // Predicated region
    $region10: #{tpu_custom_call.1} parent=1 // pred_check
      _
    $region11: #{tpu_custom_call.1} parent=1 // pred_check_branch
      %33 = sbr.rel (0) target = $region13
    $region12: #{tpu_custom_call.1} parent=1 // pred_region
      %34 = dma.done [#allocation3], 32
    $region13: #{tpu_custom_call.1} parent=1 // pred_fallthru
      _
    // Predicated region
    $region14: #{tpu_custom_call.1} parent=1 // pred_check
      _
    $region15: #{tpu_custom_call.1} parent=1 // pred_check_branch
      %36 = sbr.rel (0) target = $region17
    $region16: #{tpu_custom_call.1} parent=1 // pred_region
      %37 = dma.done [#allocation6], 256
    $region17: #{tpu_custom_call.1} parent=1 // pred_fallthru
      _
    %p38 = scmp.eq.s32.totalorder 0, 0
    // Predicated region
    $region18: #{tpu_custom_call.1} parent=1 // pred_check
      %p39 = pneg %p38
    $region19: #{tpu_custom_call.1} parent=1 // pred_check_branch
      %41 = sbr.rel (%p39) target = $region21
    $region20: #{tpu_custom_call.1} parent=1 // pred_region
      %vm42 = vcmask 254976
      %43 = vst.msk [vmem:[#allocation7] sm:$0x3] %vm42, 0.0
    $region21: #{tpu_custom_call.1} parent=1 // pred_fallthru
      _
    %v44 = vld [vmem:[#allocation5] sm:$0xff]
    %v45 = vld [vmem:[#allocation5 + $0x8] sm:$0xff]
    %v46 = vld [vmem:[#allocation2] sm:$0x3]
    %s47 = smul.u32 0, 8
    %v48 = vstv %s47
    %v49 = vsub.s32 %v46, %v48
    %v50 = vlaneseq
    %v51 = vshrl.u32 %v50, 7
    %v53 = vunpack.c.l.s4 1966171168
    %v54 = vunpack.c.0.s8 %v53
    %v55 = vlaneseq
    %v56 = vshrl.u32 %v55, 7
    %v57 = vsub.s32 %v54, %v56
    %v58 = vrot.slane %v49, %v57
    %v59 = vcombine.high %v58, %v58
    %v61 = vunpack.c.l.s4 1966171168
    %v62 = vunpack.c.0.s8 %v61
    %v63 = vlaneseq
    %v64 = vshrl.u32 %v63, 7
    %v65 = vsub.s32 %v62, %v64
    %v66 = vrot.slane %v58, %v65
    %v68 = vunpack.c.l.s4 1966171168
    %v69 = vunpack.c.0.s8 %v68
    %v70 = vlaneseq
    %v71 = vshrl.u32 %v70, 7
    %v72 = vsub.s32 %v69, %v71
    %v73 = vrot.slane %v59, %v72
    %v74 = vlaneseq
    %v75 = vshrl.u32 %v74, 7
    %v76 = vsub.s32 0, %v75
    %v77 = vrot.slane %v66, %v76
    %v78 = vlaneseq
    %v79 = vshrl.u32 %v78, 7
    %v80 = vsub.s32 0, %v79
    %v81 = vrot.slane %v73, %v80
    %vm82 = vcmp.eq.s32.totalorder %v51, %v77
    %vm83 = vcmp.eq.s32.totalorder %v51, %v81
    %v84 = vsel %vm82, %v44, 0.0
    %v85 = vsel %vm83, %v45, 0.0
    %vm86 = vcmask 261120
    %v87 = vsel %vm86, %v84, 0.0
    %v88 = vrot.slane %v87, 4
    %v89 = vadd.f32 %v87, %v88
    %v90 = vrot.slane %v89, 2
    %v91 = vadd.f32 %v89, %v90
    %v92 = vrot.slane %v91, 1
    %v93 = vadd.f32 %v91, %v92
    %v94 = vsel %vm86, %v85, 0.0
    %v95 = vrot.slane %v94, 4
    %v96 = vadd.f32 %v94, %v95
    %v97 = vrot.slane %v96, 2
    %v98 = vadd.f32 %v96, %v97
    %v99 = vrot.slane %v98, 1
    %v100 = vadd.f32 %v98, %v99
    %v101 = vld [vmem:[#allocation7] sm:$0x3]
    %vm104 = vcmask 1041409
    %v105 = vsel %vm104, %v100, %v93
    %v107 = vadd.f32 %v101, %v105
    %vm108 = vcmask 254976
    %109 = vst.msk [vmem:[#allocation7] sm:$0x3] %vm108, %v107
    // Predicated region
    $region22: #{tpu_custom_call.1} parent=1 // pred_check
      _
    $region23: #{tpu_custom_call.1} parent=1 // pred_check_branch
      %111 = sbr.rel (0) target = $region25
    $region24: #{tpu_custom_call.1} parent=1 // pred_region
      %s113 = ssub.s32 32, 32
      %114 = vsyncadd [#allocation4], %s113
      %s116 = sshll.u32 [#allocation7], 4
      %s117 = int_to_ptr.vmem [resolvable:$true] %s116
      %119 = dma.vmem_to_hbm [thread:$0]  %s117, 32, %s2, [#allocation4]
    $region25: #{tpu_custom_call.1} parent=1 // pred_fallthru
      _
    // Predicated region
    $region26: #{tpu_custom_call.1} parent=1 // pred_check
      _
    $region27: #{tpu_custom_call.1} parent=1 // pred_check_branch
      %121 = sbr.rel (0) target = $region29
    $region28: #{tpu_custom_call.1} parent=1 // pred_region
      %122 = dma.done [#allocation4], 32
    $region29: #{tpu_custom_call.1} parent=1 // pred_fallthru
      _
    %123 = vsyncpa [#allocation3], 1
    %124 = vsyncpa [#allocation6], 1
    %125 = vsyncpa [#allocation4], 1

</llo_original>
